<compile_context>
chip_gen: v5e
topology: v5e:2x2
jax: 0.10.0
libtpu: 0.0.40
codegen_flags: <defaults>
</compile_context>

<pallas_src>
import jax
import jax.numpy as jnp
from jax import lax
from jax.experimental import pallas as pl
from jax.experimental.pallas import tpu as pltpu


# ----------------------------------------------------------------- helpers ---

def _round_up(x, m):
    return ((x + m - 1) // m) * m


def _tile_and_pad(extent, cap, align):
    """Pick (tile, padded_extent) with tile <= cap, tile | padded_extent.

    extent <= cap : full-extent block (always legal), no padding.
    extent  > cap : `align`-aligned tile ~cap; pad the axis to a multiple of it
                    (bounded edge tiles instead of one giant block).
    """
    if extent <= cap:
        return extent, extent
    tile = max(align, (cap // align) * align)
    return tile, _round_up(extent, tile)


def _linear_config():
    """Generation-aware matmul tile caps."""
    kind = ""
    try:
        kind = jax.devices()[0].device_kind.lower()
    except Exception:
        pass
    if ("v5" in kind) or ("v6" in kind):
        # 128 MiB physical VMEM: larger tiles, raise the scoped limit.
        return dict(tm_cap=512, tn_cap=1024, tk_cap=1024,
                    vmem_limit=96 * 1024 * 1024)
    # v7x (64 MiB physical / 32 MiB scoped default) and unknown chips.
    return dict(tm_cap=256, tn_cap=512, tk_cap=512, vmem_limit=None)


# ------------------------------------------------------------ linear kernel --

def _linear_kernel_acc(x_ref, w_ref, b_ref, o_ref, acc_ref):
    # Grid: (i rows, j output cols, k contraction); non-f32 output path.
    @pl.when(pl.program_id(2) == 0)
    def _init():
        acc_ref[...] = jnp.zeros_like(acc_ref)

    acc_ref[...] += jnp.dot(x_ref[...], w_ref[...],
                            preferred_element_type=jnp.float32)

    @pl.when(pl.program_id(2) == pl.num_programs(2) - 1)
    def _finalize():
        o_ref[...] = (acc_ref[...] + b_ref[...].astype(jnp.float32)
                      ).astype(o_ref.dtype)


def _linear_kernel_f32(x_ref, w_ref, b_ref, o_ref):
    # f32 output: accumulate straight into the VMEM-resident output block.
    @pl.when(pl.program_id(2) == 0)
    def _init():
        o_ref[...] = jnp.zeros_like(o_ref)

    o_ref[...] += jnp.dot(x_ref[...], w_ref[...],
                          preferred_element_type=jnp.float32)

    @pl.when(pl.program_id(2) == pl.num_programs(2) - 1)
    def _finalize():
        o_ref[...] += b_ref[...].astype(jnp.float32)


def _linear(x2d, w, b):
    """y = x2d @ w + b   (x2d: (M,K), w: (K,Nout), b: (Nout,))."""
    M, K = x2d.shape
    Kw, Nout = w.shape
    assert K == Kw
    cfg = _linear_config()

    tm, m_pad = _tile_and_pad(M, cfg["tm_cap"], 8)
    tk, k_pad = _tile_and_pad(K, cfg["tk_cap"], 128)
    tn, n_pad = _tile_and_pad(Nout, cfg["tn_cap"], 128)

    xp = x2d if (m_pad == M and k_pad == K) else jnp.pad(
        x2d, ((0, m_pad - M), (0, k_pad - K)))
    wp = w if (k_pad == K and n_pad == Nout) else jnp.pad(
        w, ((0, k_pad - K), (0, n_pad - Nout)))
    bp = b if n_pad == Nout else jnp.pad(b, (0, n_pad - Nout))
    bp = bp.reshape(1, n_pad)

    grid = (m_pad // tm, n_pad // tn, k_pad // tk)
    out_dtype = x2d.dtype
    if out_dtype == jnp.float32:
        kernel, scratch = _linear_kernel_f32, []
    else:
        kernel, scratch = _linear_kernel_acc, [pltpu.VMEM((tm, tn), jnp.float32)]

    cp_kwargs = dict(dimension_semantics=("parallel", "parallel", "arbitrary"))
    if cfg["vmem_limit"] is not None:
        cp_kwargs["vmem_limit_bytes"] = cfg["vmem_limit"]

    y = pl.pallas_call(
        kernel,
        out_shape=jax.ShapeDtypeStruct((m_pad, n_pad), out_dtype),
        grid=grid,
        in_specs=[
            pl.BlockSpec((tm, tk), lambda i, j, k: (i, k)),
            pl.BlockSpec((tk, tn), lambda i, j, k: (k, j)),
            pl.BlockSpec((1, tn), lambda i, j, k: (0, j)),
        ],
        out_specs=pl.BlockSpec((tm, tn), lambda i, j, k: (i, j)),
        scratch_shapes=scratch,
        compiler_params=pltpu.CompilerParams(**cp_kwargs),
    )(xp, wp, bp)

    if m_pad != M or n_pad != Nout:
        y = y[:M, :Nout]
    return y


# --------------------------------------------------------- attention kernel --

def _attn_seq_tiling(n):
    """(padded token count, query tile)."""
    if n <= 128:
        n_pad = _round_up(n, 8)
        return n_pad, n_pad                       # single lane-aligned q tile
    n_pad = _round_up(n, 128)                     # lane-dense scores / attn
    tq = 256 if n_pad % 256 == 0 else 128
    return n_pad, tq


def _make_attn_kernel(scale, n_real, return_attn):
    def kernel(q_ref, k_ref, v_ref, o_ref, *rest):
        # q_ref: (tq, dh); k_ref, v_ref: (N_pad, dh); o_ref: (tq, dh).
        # Fold the softmax scale into q: N*dh VALU work instead of N*N.
        q = (q_ref[...].astype(jnp.float32) * scale).astype(q_ref.dtype)

        # s = q @ k^T as an NT contraction on the last dims (no in-kernel k.T);
        # native-dtype MXU operands, f32 accumulation.
        s = lax.dot_general(q, k_ref[...], (((1,), (1,)), ((), ())),
                            preferred_element_type=jnp.float32)   # (tq, N_pad)

        n_pad = k_ref.shape[0]
        if n_pad != n_real:                       # static check — mask pad keys
            key_idx = lax.broadcasted_iota(jnp.int32, s.shape, 1)
            s = jnp.where(key_idx < n_real, s, jnp.float32(-1e30))

        m = jnp.max(s, axis=-1, keepdims=True)
        p = jnp.exp(s - m)
        inv = pl.reciprocal(jnp.sum(p, axis=-1, keepdims=True), approx=True)

        if return_attn:
            attn = p * inv
            rest[0][...] = attn.astype(rest[0].dtype)
            o = jnp.dot(attn.astype(v_ref.dtype), v_ref[...],
                        preferred_element_type=jnp.float32)
        else:
            # Normalize after PV: reciprocal-mul on (tq, dh) instead of (tq, N).
            o = jnp.dot(p.astype(v_ref.dtype), v_ref[...],
                        preferred_element_type=jnp.float32) * inv
        o_ref[...] = o.astype(o_ref.dtype)

    return kernel


def _attention_core(q, k, v, *, scale, n_real, tq, out_dtype, return_attn):
    """q, k, v: (B*H, N_pad, dh).  Returns (out (B*H, N_pad, dh), attn | None)."""
    bh, n_pad, dh = q.shape
    grid = (bh, n_pad // tq)
    kernel = _make_attn_kernel(scale, n_real, return_attn)

    in_specs = [
        pl.BlockSpec((None, tq, dh), lambda b, qi: (b, qi, 0)),
        # K/V index_maps are constant across the q-tile axis -> DMA'd once per
        # (batch, head), kept resident across all query tiles.
        pl.BlockSpec((None, n_pad, dh), lambda b, qi: (b, 0, 0)),
        pl.BlockSpec((None, n_pad, dh), lambda b, qi: (b, 0, 0)),
    ]
    o_spec = pl.BlockSpec((None, tq, dh), lambda b, qi: (b, qi, 0))
    o_shape = jax.ShapeDtypeStruct((bh, n_pad, dh), out_dtype)
    if return_attn:
        out_specs = (o_spec,
                     pl.BlockSpec((None, tq, n_pad), lambda b, qi: (b, qi, 0)))
        out_shape = (o_shape,
                     jax.ShapeDtypeStruct((bh, n_pad, n_pad), out_dtype))
    else:
        out_specs, out_shape = o_spec, o_shape

    res = pl.pallas_call(
        kernel,
        out_shape=out_shape,
        grid=grid,
        in_specs=in_specs,
        out_specs=out_specs,
        compiler_params=pltpu.CompilerParams(
            dimension_semantics=("parallel", "arbitrary")),
    )(q, k, v)

    if return_attn:
        return res[0], res[1]
    return res, None


# ----------------------------------------------------------------- module ----

def init_attention_params(key, dim):
    """Synthetic weights. nn.Linear stores (out, in); transpose ONCE here so the
    forward pass never pays a per-call transpose."""
    k1, k2, k3, k4 = jax.random.split(key, 4)
    qkv_w = jax.random.normal(k1, (3 * dim, dim), jnp.float32) * 0.02
    proj_w = jax.random.normal(k3, (dim, dim), jnp.float32) * 0.02
    return {
        "qkv_w": qkv_w.T,                                      # (dim, 3*dim)
        "qkv_b": jax.random.normal(k2, (3 * dim,), jnp.float32) * 0.02,
        "proj_w": proj_w.T,                                    # (dim, dim)
        "proj_b": jax.random.normal(k4, (dim,), jnp.float32) * 0.02,
    }


def attention_forward(x, params, num_heads, *, return_attn=True):
    """Matches Attention.forward: returns (proj(attn @ v), attn).

    Set return_attn=False to skip the O(B*H*N^2) attention-probability HBM
    writeback when callers only need the projected output.
    """
    B, N, C = x.shape
    H = num_heads
    dh = C // H
    scale = dh ** (-0.5)

    # qkv projection (tiled Pallas matmul) -> packed (B*N, 3C).
    qkv = _linear(x.reshape(B * N, C), params["qkv_w"], params["qkv_b"])

    # Split into per-head q/k/v, shape (B*H, N, dh).  This transpose is
    # O(B*N*C) HBM traffic (small vs. attention math) and buys fully aligned
    # per-head blocks for the attention kernel.
    qkv = qkv.reshape(B, N, 3, H, dh).transpose(2, 0, 3, 1, 4)   # (3,B,H,N,dh)
    q = qkv[0].reshape(B * H, N, dh)
    k = qkv[1].reshape(B * H, N, dh)
    v = qkv[2].reshape(B * H, N, dh)

    # Pad the token axis to a lane-friendly multiple; pad keys are masked in
    # the kernel, pad query rows are sliced away below.
    n_pad, tq = _attn_seq_tiling(N)
    if n_pad != N:
        pad = ((0, 0), (0, n_pad - N), (0, 0))
        q, k, v = jnp.pad(q, pad), jnp.pad(k, pad), jnp.pad(v, pad)

    out, attn = _attention_core(q, k, v, scale=scale, n_real=N, tq=tq,
                                out_dtype=x.dtype, return_attn=return_attn)

    out = out.reshape(B, H, n_pad, dh)[:, :, :N]          # (B, H, N, dh)
    out = out.transpose(0, 2, 1, 3).reshape(B * N, C)     # head-merge

    # Output projection (tiled Pallas matmul).
    y = _linear(out, params["proj_w"], params["proj_b"]).reshape(B, N, C)

    if return_attn:
        attn = attn.reshape(B, H, n_pad, n_pad)[:, :, :N, :N]
    return y, attn


# ---------------------------------------------------------------- reference --

def _reference(x, params, num_heads):
    B, N, C = x.shape
    Dh = C // num_heads
    qkv = x @ params["qkv_w"] + params["qkv_b"]
    qkv = qkv.reshape(B, N, 3, num_heads, Dh).transpose(2, 0, 3, 1, 4)
    q, k, v = qkv[0], qkv[1], qkv[2]
    s = jnp.einsum("bhqd,bhkd->bhqk", q, k) * (Dh ** -0.5)
    attn = jax.nn.softmax(s, axis=-1)
    o = jnp.einsum("bhqk,bhkd->bhqd", attn, v)
    o = o.transpose(0, 2, 1, 3).reshape(B, N, C)
    o = o @ params["proj_w"] + params["proj_b"]
    return o, attn


# --------------------------------------------------------------------- main --

if __name__ == "__main__":
    B, N, dim, num_heads = 2, 8, 32, 4

    key = jax.random.PRNGKey(0)
    kx, kp = jax.random.split(key)
    x = jax.random.normal(kx, (B, N, dim), jnp.float32)
    params = init_attention_params(kp, dim)

    out, attn = attention_forward(x, params, num_heads)
    out = jax.block_until_ready(out)
    attn = jax.block_until_ready(attn)

    ref_out, ref_attn = _reference(x, params, num_heads)
    assert out.shape == (B, N, dim) and attn.shape == (B, num_heads, N, N)
    # Tolerances relaxed slightly vs 1e-5 because of pl.reciprocal(approx=True)
    # in the softmax denominator (EUP fast reciprocal).
    assert jnp.allclose(out, ref_out, atol=2e-3, rtol=2e-2)
    assert jnp.allclose(attn, ref_attn, atol=2e-3, rtol=2e-2)

    # Fast path that skips the attention-probability writeback entirely.
    out_noattn, _ = attention_forward(x, params, num_heads, return_attn=False)
    out_noattn = jax.block_until_ready(out_noattn)
    assert jnp.allclose(out_noattn, ref_out, atol=2e-3, rtol=2e-2)

    print("KERNEL_OK")
</pallas_src>

<mosaic_0001>
module attributes {stable_mosaic.version = 11 : i64} {
  func.func @_linear_kernel_f32(%arg0: i32, %arg1: i32, %arg2: i32, %arg3: memref<16x32xf32, #tpu.memory_space<vmem>>, %arg4: memref<32x96xf32, #tpu.memory_space<vmem>>, %arg5: memref<1x96xf32, #tpu.memory_space<vmem>>, %arg6: memref<16x96xf32, #tpu.memory_space<vmem>>) attributes {dimension_semantics = [#tpu.dimension_semantics<parallel>, #tpu.dimension_semantics<parallel>, #tpu.dimension_semantics<arbitrary>], iteration_bounds = array<i64: 1, 1, 1>, scalar_prefetch = 0 : i64, scratch_operands = 0 : i64, tpu.core_type = #tpu.core_type<tc>, window_params = [{transform_indices = @transform_0, window_bounds = array<i64: 16, 32>}, {transform_indices = @transform_1, window_bounds = array<i64: 32, 96>}, {transform_indices = @transform_2, window_bounds = array<i64: 1, 96>}, {transform_indices = @transform_3, window_bounds = array<i64: 16, 96>}]} {
    %c0_i32 = arith.constant 0 : i32
    %0 = arith.cmpi eq, %arg2, %c0_i32 : i32
    %1 = arith.extui %0 : i1 to i32
    %c0_i32_0 = arith.constant 0 : i32
    %2 = arith.cmpi ne, %1, %c0_i32_0 : i32
    scf.if %2 {
      %cst_10 = arith.constant 0.000000e+00 : f32
      %12 = vector.broadcast %cst_10 : f32 to vector<16x96xf32>
      %c0_11 = arith.constant 0 : index
      %c0_12 = arith.constant 0 : index
      %13 = vector.load %arg6[%c0_11, %c0_12] : memref<16x96xf32, #tpu.memory_space<vmem>>, vector<16x96xf32>
      tpu.vector_store %arg6[%c0_11, %c0_12], %12 {strides = array<i32>} : memref<16x96xf32, #tpu.memory_space<vmem>>, vector<16x96xf32>,
    } else {
    }
    %c0 = arith.constant 0 : index
    %c0_1 = arith.constant 0 : index
    %3 = vector.load %arg6[%c0, %c0_1] : memref<16x96xf32, #tpu.memory_space<vmem>>, vector<16x96xf32>
    %c0_2 = arith.constant 0 : index
    %c0_3 = arith.constant 0 : index
    %4 = vector.load %arg3[%c0_2, %c0_3] : memref<16x32xf32, #tpu.memory_space<vmem>>, vector<16x32xf32>
    %c0_4 = arith.constant 0 : index
    %c0_5 = arith.constant 0 : index
    %5 = vector.load %arg4[%c0_4, %c0_5] : memref<32x96xf32, #tpu.memory_space<vmem>>, vector<32x96xf32>
    %cst = arith.constant dense<0.000000e+00> : vector<16x96xf32>
    %6 = tpu.matmul %4, %5, %cst {dimension_numbers = #tpu.dot_dimension_numbers<[1], [0], [0], [1], [0, 0, 1, 1], [], []>} : vector<16x32xf32>, vector<32x96xf32>, vector<16x96xf32> -> vector<16x96xf32>
    %7 = arith.addf %3, %6 : vector<16x96xf32>
    %c0_6 = arith.constant 0 : index
    %c0_7 = arith.constant 0 : index
    %8 = vector.load %arg6[%c0_6, %c0_7] : memref<16x96xf32, #tpu.memory_space<vmem>>, vector<16x96xf32>
    tpu.vector_store %arg6[%c0_6, %c0_7], %7 {strides = array<i32>} : memref<16x96xf32, #tpu.memory_space<vmem>>, vector<16x96xf32>,
    %c0_i32_8 = arith.constant 0 : i32
    %9 = arith.cmpi eq, %arg2, %c0_i32_8 : i32
    %10 = arith.extui %9 : i1 to i32
    %c0_i32_9 = arith.constant 0 : i32
    %11 = arith.cmpi ne, %10, %c0_i32_9 : i32
    scf.if %11 {
      %c0_10 = arith.constant 0 : index
      %c0_11 = arith.constant 0 : index
      %12 = vector.load %arg6[%c0_10, %c0_11] : memref<16x96xf32, #tpu.memory_space<vmem>>, vector<16x96xf32>
      %c0_12 = arith.constant 0 : index
      %c0_13 = arith.constant 0 : index
      %13 = vector.load %arg5[%c0_12, %c0_13] : memref<1x96xf32, #tpu.memory_space<vmem>>, vector<1x96xf32>
      %14 = vector.broadcast %13 : vector<1x96xf32> to vector<16x96xf32>
      %15 = arith.addf %12, %14 : vector<16x96xf32>
      %c0_14 = arith.constant 0 : index
      %c0_15 = arith.constant 0 : index
      %16 = vector.load %arg6[%c0_14, %c0_15] : memref<16x96xf32, #tpu.memory_space<vmem>>, vector<16x96xf32>
      tpu.vector_store %arg6[%c0_14, %c0_15], %15 {strides = array<i32>} : memref<16x96xf32, #tpu.memory_space<vmem>>, vector<16x96xf32>,
    } else {
    }
    return
  }
  func.func @transform_0(%arg0: i32, %arg1: i32, %arg2: i32) -> (i32, i32) {
    %c0_i32 = arith.constant 0 : i32
    return %arg0, %arg2 : i32, i32
  }
  func.func @transform_1(%arg0: i32, %arg1: i32, %arg2: i32) -> (i32, i32) {
    %c0_i32 = arith.constant 0 : i32
    return %arg2, %arg1 : i32, i32
  }
  func.func @transform_2(%arg0: i32, %arg1: i32, %arg2: i32) -> (i32, i32) {
    %c0_i32 = arith.constant 0 : i32
    %c0_i32_0 = arith.constant 0 : i32
    return %c0_i32, %arg1 : i32, i32
  }
  func.func @transform_3(%arg0: i32, %arg1: i32, %arg2: i32) -> (i32, i32) {
    %c0_i32 = arith.constant 0 : i32
    return %arg0, %arg1 : i32, i32
  }
}

</mosaic_0001>

<llo_original>
// kernel: tpu_custom_call.1
$region0: #{tpu_custom_call.1}
  #allocation0 [shape = 'u32[]', space=smem, size = 0x4, offset = 0x4, fixed_abs, tag = 'smem constant byte address 0x4 - core index']
  #allocation1 [shape = 'u32[72,128]{1,0:T(1,128)}', space=vmem, size = 0x9000, scoped, tag = 'internal scratch']
  %s0 = inlined_call_operand.hbm [shape: f32[16,32], index: 0, kind: input, shape index: {}]
  %s1 = inlined_call_operand.hbm [shape: f32[32,96], index: 1, kind: input, shape index: {}]
  %s2 = inlined_call_operand.vmem [shape: f32[1,96], index: 2, kind: input, shape index: {}]
  %s3 = inlined_call_operand.hbm [shape: f32[16,96], index: 3, kind: output, shape index: {}]
  %s4 = sld [smem:[#allocation0]]
  $region38: #{tpu_custom_call.1} parent=0
    _
  %s6 = ssub.s32 1, %s4
  %s7 = scalar_select 0, %s6, %s4
  $region1: #{tpu_custom_call.1} parent=0
    #allocation2 [shape = 'u8[8192]{0}', space=vmem, size = 0x2000, scoped, tag = 'input window, operand 0, single buffered']
    #allocation3 [shape = 's32[1]{0}', space=sflag, size = 0x4, scoped, tag = 'scoped memory for tpu_custom_call.1']
    #allocation4 [shape = 's32[1]{0}', space=sflag, size = 0x4, scoped, tag = 'scoped memory for tpu_custom_call.1']
    #allocation5 [shape = 'u8[16384]{0}', space=vmem, size = 0x4000, scoped, tag = 'input window, operand 1, single buffered']
    #allocation6 [shape = 's32[1]{0}', space=sflag, size = 0x4, scoped, tag = 'scoped memory for tpu_custom_call.1']
    #allocation7 [shape = 'u8[8192]{0}', space=vmem, size = 0x2000, scoped, tag = 'output window, operand 0, single buffered']
    %8 = vsyncpa [#allocation3], 0
    %9 = vsyncpa [#allocation6], 0
    %10 = vsyncpa [#allocation4], 0
    // Predicated region
    $region2: #{tpu_custom_call.1} parent=1 // pred_check
      _
    $region3: #{tpu_custom_call.1} parent=1 // pred_check_branch
      %12 = sbr.rel (0) target = $region5
    $region4: #{tpu_custom_call.1} parent=1 // pred_region
      %14 = vsyncadd [#allocation3], 0
      %s15 = sshll.u32 %s0, 4
      %s16 = int_to_ptr.hbm [resolvable:$true] %s15
      %s17 = sshll.u32 [#allocation2], 4
      %s18 = int_to_ptr.vmem [resolvable:$true] %s17
      %23 = dma.hbm_to_vmem [thread:$0]  %s16, 256, %s18, [#allocation3], 128, 128, 8
    $region5: #{tpu_custom_call.1} parent=1 // pred_fallthru
      _
    // Predicated region
    $region6: #{tpu_custom_call.1} parent=1 // pred_check
      _
    $region7: #{tpu_custom_call.1} parent=1 // pred_check_branch
      %25 = sbr.rel (0) target = $region9
    $region8: #{tpu_custom_call.1} parent=1 // pred_region
      %27 = vsyncadd [#allocation6], 0
      %s28 = sshll.u32 %s1, 4
      %s29 = int_to_ptr.hbm [resolvable:$true] %s28
      %s30 = sshll.u32 [#allocation5], 4
      %s31 = int_to_ptr.vmem [resolvable:$true] %s30
      %36 = dma.hbm_to_vmem [thread:$0]  %s29, 512, %s31, [#allocation6], 128, 128, 8
    $region9: #{tpu_custom_call.1} parent=1 // pred_fallthru
      _
    // Predicated region
    $region10: #{tpu_custom_call.1} parent=1 // pred_check
      _
    $region11: #{tpu_custom_call.1} parent=1 // pred_check_branch
      %38 = sbr.rel (0) target = $region13
    $region12: #{tpu_custom_call.1} parent=1 // pred_region
      _
    $region13: #{tpu_custom_call.1} parent=1 // pred_fallthru
      _
    // Predicated region
    $region14: #{tpu_custom_call.1} parent=1 // pred_check
      _
    $region15: #{tpu_custom_call.1} parent=1 // pred_check_branch
      %40 = sbr.rel (0) target = $region17
    $region16: #{tpu_custom_call.1} parent=1 // pred_region
      %42 = dma.done [#allocation3], 256
    $region17: #{tpu_custom_call.1} parent=1 // pred_fallthru
      _
    // Predicated region
    $region18: #{tpu_custom_call.1} parent=1 // pred_check
      _
    $region19: #{tpu_custom_call.1} parent=1 // pred_check_branch
      %44 = sbr.rel (0) target = $region21
    $region20: #{tpu_custom_call.1} parent=1 // pred_region
      %46 = dma.done [#allocation6], 512
    $region21: #{tpu_custom_call.1} parent=1 // pred_fallthru
      _
    %p47 = scmp.eq.s32.totalorder 0, 0
    // Predicated region
    $region22: #{tpu_custom_call.1} parent=1 // pred_check
      %p48 = pneg %p47
    $region23: #{tpu_custom_call.1} parent=1 // pred_check_branch
      %50 = sbr.rel (%p48) target = $region25
    $region24: #{tpu_custom_call.1} parent=1 // pred_region
      %vm51 = vcmask 785408
      %52 = vst.msk [vmem:[#allocation7] sm:$0xff] %vm51, 0.0
      %53 = vst.msk [vmem:[#allocation7 + $0x8] sm:$0xff] %vm51, 0.0
    $region25: #{tpu_custom_call.1} parent=1 // pred_fallthru
      _
    %v54 = vld [vmem:[#allocation7] sm:$0xff]
    %v55 = vld [vmem:[#allocation7 + $0x8] sm:$0xff]
    %v56 = vld [vmem:[#allocation2] sm:$0xff]
    %v57 = vld [vmem:[#allocation2 + $0x8] sm:$0xff]
    %v58 = vld [vmem:[#allocation5] sm:$0xff]
    %v59 = vld [vmem:[#allocation5 + $0x8] sm:$0xff]
    %v60 = vld [vmem:[#allocation5 + $0x10] sm:$0xff]
    %v61 = vld [vmem:[#allocation5 + $0x18] sm:$0xff]
    %vm62 = vcmask 261120
    %v64 = vsel %vm62, %v56, 0
    %v67 = vsel %vm62, %v57, 0
    %69 = vmatpush.msra.mxu0 0.0
    %70 = vmatpush.msra.mxu0 0.0
    %71 = vmatpush.msra.mxu0 0.0
    %72 = vmatpush.msra.mxu0 0.0
    %73 = vmatpush.msra.mxu0 0.0
    %74 = vmatpush.msra.mxu0 0.0
    %75 = vmatpush.msra.mxu0 0.0
    %76 = vmatpush.msra.mxu0 0.0
    %77 = vmatpush.msra.mxu0 0.0
    %78 = vmatpush.msra.mxu0 0.0
    %79 = vmatpush.msra.mxu0 0.0
    %80 = vmatpush.msra.mxu0 0.0
    %81 = vmatpush.msra.mxu0 %v61
    %82 = vmatpush.msra.mxu0 %v60
    %83 = vmatpush.msra.mxu0 %v59
    %84 = vmatpush.msra.mxu0 %v58
    %85 = vmatmul.f32.gmra.mxu0 %v64
    %v86 = vpop.f32.mrf.mxu0
    %v87 = vadd.f32 0.0, %v86
    %88 = vmatmul.f32.gmra.mxu0 %v67
    %v89 = vpop.f32.mrf.mxu0
    %v90 = vadd.f32 0.0, %v89
    %91 = vdwg.mxu0
    %v92 = vadd.f32 %v54, %v87
    %v93 = vadd.f32 %v55, %v90
    %vm94 = vcmask 785408
    %95 = vst.msk [vmem:[#allocation7] sm:$0xff] %vm94, %v92
    %96 = vst.msk [vmem:[#allocation7 + $0x8] sm:$0xff] %vm94, %v93
    // Predicated region
    $region26: #{tpu_custom_call.1} parent=1 // pred_check
      %p97 = pneg %p47
    $region27: #{tpu_custom_call.1} parent=1 // pred_check_branch
      %99 = sbr.rel (%p97) target = $region29
    $region28: #{tpu_custom_call.1} parent=1 // pred_region
      %v100 = vld [vmem:[#allocation7] sm:$0xff]
      %v101 = vld [vmem:[#allocation7 + $0x8] sm:$0xff]
      %v102 = vld [vmem:[%s2] sm:$0x1]
      %v104 = vperm.slane %v102, 0
      %v106 = vadd.f32 %v100, %v104
      %v107 = vadd.f32 %v101, %v104
      %108 = vst.msk [vmem:[#allocation7] sm:$0xff] %vm94, %v106
      %109 = vst.msk [vmem:[#allocation7 + $0x8] sm:$0xff] %vm94, %v107
    $region29: #{tpu_custom_call.1} parent=1 // pred_fallthru
      _
    // Predicated region
    $region30: #{tpu_custom_call.1} parent=1 // pred_check
      _
    $region31: #{tpu_custom_call.1} parent=1 // pred_check_branch
      %111 = sbr.rel (0) target = $region33
    $region32: #{tpu_custom_call.1} parent=1 // pred_region
      %113 = vsyncadd [#allocation4], 0
      %s114 = sshll.u32 [#allocation7], 4
      %s115 = int_to_ptr.vmem [resolvable:$true] %s114
      %s116 = sshll.u32 %s3, 4
      %s117 = int_to_ptr.hbm [resolvable:$true] %s116
      %122 = dma.vmem_to_hbm [thread:$0]  %s115, 256, %s117, [#allocation4], 128, 128, 8
    $region33: #{tpu_custom_call.1} parent=1 // pred_fallthru
      _
    // Predicated region
    $region34: #{tpu_custom_call.1} parent=1 // pred_check
      _
    $region35: #{tpu_custom_call.1} parent=1 // pred_check_branch
      %124 = sbr.rel (0) target = $region37
    $region36: #{tpu_custom_call.1} parent=1 // pred_region
      %126 = dma.done [#allocation4], 256
    $region37: #{tpu_custom_call.1} parent=1 // pred_fallthru
      _
    %127 = vsyncpa [#allocation3], 1
    %128 = vsyncpa [#allocation6], 1
    %129 = vsyncpa [#allocation4], 1

</llo_original>
